<compile_context>
chip_gen: v7x
topology: tpu7x:2x2x1
jax: 0.10.0
libtpu: 0.0.40
codegen_flags: <defaults>
</compile_context>

<pallas_src>
import jax
import jax.numpy as jnp
import numpy as np
from jax.experimental import pallas as pl
from jax.experimental.pallas import tpu as pltpu

EPS = 1e-5  # nn.BatchNorm2d default eps


def _shift2d(a, dh, dw, col_idx):
    """result[n, h, w] = a[n, h + dh, w + dw], zero-filled outside bounds.

    Implements the conv's padding=1 without any padded scratch tile:
      * W (lane) axis : circular pltpu.roll on the XLU + jnp.where column mask.
      * H (sublane) axis: static slice + zero-row concat.
    dh, dw are in {-1, 0, +1} (static Python ints).
    """
    N, H, W = a.shape
    if dw != 0:
        a = pltpu.roll(a, shift=(-dw) % W, axis=2)       # r[..., w] = a[..., (w+dw) mod W]
        if dw > 0:
            a = jnp.where(col_idx < W - dw, a, 0.0)      # zero the wrapped last column(s)
        else:
            a = jnp.where(col_idx >= -dw, a, 0.0)        # zero the wrapped first column(s)
    if dh != 0:
        zrow = jnp.zeros((N, 1, W), a.dtype)
        if dh > 0:
            a = jnp.concatenate([a[:, dh:, :], zrow], axis=1)
        else:
            a = jnp.concatenate([zrow, a[:, :dh, :]], axis=1)
    return a


def debugnet_kernel(w_ref, scal_ref, x_ref, out_ref):
    """Single invocation over the whole batch.

    w_ref    : SMEM (C*9,)        flattened Conv2d(C, 1, 3, 3) weight
    scal_ref : SMEM (3,)          [conv bias, BN gamma, BN beta]
    x_ref    : VMEM (N, C, H, W)  full input batch
    out_ref  : VMEM (N, H, W)     full result
    """
    N, C, H, W = x_ref.shape
    x = x_ref[...]                                        # (N, C, H, W) f32

    # Lane-index mask used by the W-axis shifts (hoisted: built once).
    col = jax.lax.broadcasted_iota(jnp.int32, (N, H, W), 2)

    # --- 3x3 conv, stride 1, padding 1, single output channel --------------
    # For each tap: channel-weighted sum (scalar * vreg multiply-adds on the
    # VPU), then one (dh, dw) shift of the (N, H, W) partial on the XLU.
    # Deliberately NOT an MXU matmul (1 output channel -> 1/128..1/256 of the
    # MXU columns).  C is tiny so the channel loop is a static unroll; for
    # large C switch it to lax.fori_loop(unroll=True) to bound live ranges.
    acc = jnp.zeros((N, H, W), jnp.float32)
    for kh in range(3):
        for kw in range(3):
            s = w_ref[0 * 9 + kh * 3 + kw] * x[:, 0]
            for c in range(1, C):
                s = s + w_ref[c * 9 + kh * 3 + kw] * x[:, c]
            acc = acc + _shift2d(s, kh - 1, kw - 1, col)

    # --- BatchNorm2d(1) (training mode, exact batch stats) + ReLU + Sigmoid -
    # Conv bias is folded into the BN shift:
    #   mean(conv) = mean(acc) + bias, var(conv) = var(acc)
    #   (conv - mean)*s + beta = acc*s + (beta - mean(acc)*s)
    bias = scal_ref[0]
    gamma = scal_ref[1]
    beta = scal_ref[2]
    del bias  # folded away exactly; kept for clarity of the algebra above

    mean_nob = jnp.mean(acc)
    var = jnp.mean((acc - mean_nob) ** 2)
    s_bn = gamma * jax.lax.rsqrt(var + EPS)
    t_bn = beta - mean_nob * s_bn
    z = acc * s_bn + t_bn

    # torch.sum over the channel axis is the identity here (1 conv channel).
    out_ref[...] = jax.nn.sigmoid(jnp.maximum(z, 0.0))    # one full-block store


@jax.jit
def debugnet_forward(x, w, b, gamma, beta):
    """x: (N, C, H, W) f32; w: (1, C, 3, 3); b/gamma/beta: (1,).  Returns (N, H, W)."""
    N, C, H, W = x.shape
    w_flat = w.reshape(-1).astype(jnp.float32)                        # (C*9,)
    scal = jnp.stack([b[0], gamma[0], beta[0]]).astype(jnp.float32)   # (3,)

    return pl.pallas_call(
        debugnet_kernel,
        out_shape=jax.ShapeDtypeStruct((N, H, W), jnp.float32),
        # grid=() : the whole problem is one block; kernel body runs once.
        in_specs=[
            pl.BlockSpec(memory_space=pltpu.MemorySpace.SMEM),   # conv weight (flat)
            pl.BlockSpec(memory_space=pltpu.MemorySpace.SMEM),   # [bias, gamma, beta]
            pl.BlockSpec(memory_space=pltpu.MemorySpace.VMEM),   # full input batch
        ],
        out_specs=pl.BlockSpec(memory_space=pltpu.MemorySpace.VMEM),
    )(w_flat, scal, x)


def debugnet_reference(x, w, b, gamma, beta):
    """Pure-JAX reference matching PyTorch DebugNet.forward (training-mode BN)."""
    conv = jax.lax.conv_general_dilated(
        x, w, window_strides=(1, 1), padding=((1, 1), (1, 1)),
        dimension_numbers=("NCHW", "OIHW", "NCHW"))
    conv = conv + b[0]
    mean = jnp.mean(conv)
    var = jnp.mean((conv - mean) ** 2)
    y = (conv - mean) * jax.lax.rsqrt(var + EPS) * gamma[0] + beta[0]
    y = jax.nn.sigmoid(jnp.maximum(y, 0.0))
    return jnp.sum(y, axis=1)


if __name__ == "__main__":
    N, C, H, W = 2, 4, 16, 16

    key = jax.random.PRNGKey(0)
    kx, kw_, kb = jax.random.split(key, 3)

    x = jax.random.normal(kx, (N, C, H, W), dtype=jnp.float32)
    # Parameter shapes from nn.Conv2d(C, 1, 3) / nn.BatchNorm2d(1).
    w = jax.random.normal(kw_, (1, C, 3, 3), dtype=jnp.float32) * 0.1
    b = jax.random.normal(kb, (1,), dtype=jnp.float32) * 0.1
    gamma = jnp.ones((1,), dtype=jnp.float32)   # BatchNorm2d default weight
    beta = jnp.zeros((1,), dtype=jnp.float32)   # BatchNorm2d default bias

    out = debugnet_forward(x, w, b, gamma, beta)
    out = jax.block_until_ready(out)

    ref = debugnet_reference(x, w, b, gamma, beta)
    np.testing.assert_allclose(np.asarray(out), np.asarray(ref), rtol=1e-4, atol=1e-5)

    print("KERNEL_OK")
</pallas_src>

<mosaic_0001>
module attributes {stable_mosaic.version = 11 : i64} {
  func.func @debugnet_kernel(%arg0: memref<36xf32, #tpu.memory_space<smem>>, %arg1: memref<3xf32, #tpu.memory_space<smem>>, %arg2: memref<2x4x16x16xf32, #tpu.memory_space<vmem>>, %arg3: memref<2x16x16xf32, #tpu.memory_space<vmem>>) attributes {dimension_semantics = [], scalar_prefetch = 0 : i64, scratch_operands = 0 : i64, tpu.core_type = #tpu.core_type<tc>} {
    %c0 = arith.constant 0 : index
    %c0_0 = arith.constant 0 : index
    %c0_1 = arith.constant 0 : index
    %c0_2 = arith.constant 0 : index
    %0 = vector.load %arg2[%c0, %c0_0, %c0_1, %c0_2] : memref<2x4x16x16xf32, #tpu.memory_space<vmem>>, vector<2x4x16x16xf32>
    %1 = tpu.iota {dimensions = array<i32: 2>} : vector<2x16x16xi32>
    %cst = arith.constant 0.000000e+00 : f32
    %2 = vector.broadcast %cst : f32 to vector<2x16x16xf32>
    %c0_3 = arith.constant 0 : index
    %3 = memref.load %arg0[%c0_3] : memref<36xf32, #tpu.memory_space<smem>>
    %4 = vector.extract_strided_slice %0 {offsets = [0, 0, 0, 0], sizes = [2, 1, 16, 16], strides = [1, 1, 1, 1]} : vector<2x4x16x16xf32> to vector<2x1x16x16xf32>
    %5 = vector.shape_cast %4 : vector<2x1x16x16xf32> to vector<2x16x16xf32>
    %6 = vector.broadcast %3 : f32 to vector<2x16x16xf32>
    %7 = arith.mulf %6, %5 : vector<2x16x16xf32>
    %c9 = arith.constant 9 : index
    %8 = memref.load %arg0[%c9] : memref<36xf32, #tpu.memory_space<smem>>
    %9 = vector.extract_strided_slice %0 {offsets = [0, 1, 0, 0], sizes = [2, 1, 16, 16], strides = [1, 1, 1, 1]} : vector<2x4x16x16xf32> to vector<2x1x16x16xf32>
    %10 = vector.shape_cast %9 : vector<2x1x16x16xf32> to vector<2x16x16xf32>
    %11 = vector.broadcast %8 : f32 to vector<2x16x16xf32>
    %12 = arith.mulf %11, %10 : vector<2x16x16xf32>
    %13 = arith.addf %7, %12 : vector<2x16x16xf32>
    %c18 = arith.constant 18 : index
    %14 = memref.load %arg0[%c18] : memref<36xf32, #tpu.memory_space<smem>>
    %15 = vector.extract_strided_slice %0 {offsets = [0, 2, 0, 0], sizes = [2, 1, 16, 16], strides = [1, 1, 1, 1]} : vector<2x4x16x16xf32> to vector<2x1x16x16xf32>
    %16 = vector.shape_cast %15 : vector<2x1x16x16xf32> to vector<2x16x16xf32>
    %17 = vector.broadcast %14 : f32 to vector<2x16x16xf32>
    %18 = arith.mulf %17, %16 : vector<2x16x16xf32>
    %19 = arith.addf %13, %18 : vector<2x16x16xf32>
    %c27 = arith.constant 27 : index
    %20 = memref.load %arg0[%c27] : memref<36xf32, #tpu.memory_space<smem>>
    %21 = vector.extract_strided_slice %0 {offsets = [0, 3, 0, 0], sizes = [2, 1, 16, 16], strides = [1, 1, 1, 1]} : vector<2x4x16x16xf32> to vector<2x1x16x16xf32>
    %22 = vector.shape_cast %21 : vector<2x1x16x16xf32> to vector<2x16x16xf32>
    %23 = vector.broadcast %20 : f32 to vector<2x16x16xf32>
    %24 = arith.mulf %23, %22 : vector<2x16x16xf32>
    %25 = arith.addf %19, %24 : vector<2x16x16xf32>
    %c1_i32 = arith.constant 1 : i32
    %26 = tpu.dynamic_rotate %25 by %c1_i32 dim 2 : vector<2x16x16xf32>, i32 -> vector<2x16x16xf32>
    %c1_i32_4 = arith.constant 1 : i32
    %27 = vector.broadcast %c1_i32_4 : i32 to vector<2x16x16xi32>
    %28 = arith.cmpi sge, %1, %27 : vector<2x16x16xi32>
    %cst_5 = arith.constant 0.000000e+00 : f32
    %29 = vector.broadcast %cst_5 : f32 to vector<2x16x16xf32>
    %30 = arith.select %28, %26, %29 : vector<2x16x16xi1>, vector<2x16x16xf32>
    %cst_6 = arith.constant 0.000000e+00 : f32
    %31 = vector.broadcast %cst_6 : f32 to vector<2x1x16xf32>
    %32 = vector.extract_strided_slice %30 {offsets = [0, 0, 0], sizes = [2, 15, 16], strides = [1, 1, 1]} : vector<2x16x16xf32> to vector<2x15x16xf32>
    %33 = tpu.concatenate %31, %32 in 1 : vector<2x1x16xf32>, vector<2x15x16xf32> -> vector<2x16x16xf32>
    %34 = arith.addf %2, %33 : vector<2x16x16xf32>
    %c1 = arith.constant 1 : index
    %35 = memref.load %arg0[%c1] : memref<36xf32, #tpu.memory_space<smem>>
    %36 = vector.extract_strided_slice %0 {offsets = [0, 0, 0, 0], sizes = [2, 1, 16, 16], strides = [1, 1, 1, 1]} : vector<2x4x16x16xf32> to vector<2x1x16x16xf32>
    %37 = vector.shape_cast %36 : vector<2x1x16x16xf32> to vector<2x16x16xf32>
    %38 = vector.broadcast %35 : f32 to vector<2x16x16xf32>
    %39 = arith.mulf %38, %37 : vector<2x16x16xf32>
    %c10 = arith.constant 10 : index
    %40 = memref.load %arg0[%c10] : memref<36xf32, #tpu.memory_space<smem>>
    %41 = vector.extract_strided_slice %0 {offsets = [0, 1, 0, 0], sizes = [2, 1, 16, 16], strides = [1, 1, 1, 1]} : vector<2x4x16x16xf32> to vector<2x1x16x16xf32>
    %42 = vector.shape_cast %41 : vector<2x1x16x16xf32> to vector<2x16x16xf32>
    %43 = vector.broadcast %40 : f32 to vector<2x16x16xf32>
    %44 = arith.mulf %43, %42 : vector<2x16x16xf32>
    %45 = arith.addf %39, %44 : vector<2x16x16xf32>
    %c19 = arith.constant 19 : index
    %46 = memref.load %arg0[%c19] : memref<36xf32, #tpu.memory_space<smem>>
    %47 = vector.extract_strided_slice %0 {offsets = [0, 2, 0, 0], sizes = [2, 1, 16, 16], strides = [1, 1, 1, 1]} : vector<2x4x16x16xf32> to vector<2x1x16x16xf32>
    %48 = vector.shape_cast %47 : vector<2x1x16x16xf32> to vector<2x16x16xf32>
    %49 = vector.broadcast %46 : f32 to vector<2x16x16xf32>
    %50 = arith.mulf %49, %48 : vector<2x16x16xf32>
    %51 = arith.addf %45, %50 : vector<2x16x16xf32>
    %c28 = arith.constant 28 : index
    %52 = memref.load %arg0[%c28] : memref<36xf32, #tpu.memory_space<smem>>
    %53 = vector.extract_strided_slice %0 {offsets = [0, 3, 0, 0], sizes = [2, 1, 16, 16], strides = [1, 1, 1, 1]} : vector<2x4x16x16xf32> to vector<2x1x16x16xf32>
    %54 = vector.shape_cast %53 : vector<2x1x16x16xf32> to vector<2x16x16xf32>
    %55 = vector.broadcast %52 : f32 to vector<2x16x16xf32>
    %56 = arith.mulf %55, %54 : vector<2x16x16xf32>
    %57 = arith.addf %51, %56 : vector<2x16x16xf32>
    %cst_7 = arith.constant 0.000000e+00 : f32
    %58 = vector.broadcast %cst_7 : f32 to vector<2x1x16xf32>
    %59 = vector.extract_strided_slice %57 {offsets = [0, 0, 0], sizes = [2, 15, 16], strides = [1, 1, 1]} : vector<2x16x16xf32> to vector<2x15x16xf32>
    %60 = tpu.concatenate %58, %59 in 1 : vector<2x1x16xf32>, vector<2x15x16xf32> -> vector<2x16x16xf32>
    %61 = arith.addf %34, %60 : vector<2x16x16xf32>
    %c2 = arith.constant 2 : index
    %62 = memref.load %arg0[%c2] : memref<36xf32, #tpu.memory_space<smem>>
    %63 = vector.extract_strided_slice %0 {offsets = [0, 0, 0, 0], sizes = [2, 1, 16, 16], strides = [1, 1, 1, 1]} : vector<2x4x16x16xf32> to vector<2x1x16x16xf32>
    %64 = vector.shape_cast %63 : vector<2x1x16x16xf32> to vector<2x16x16xf32>
    %65 = vector.broadcast %62 : f32 to vector<2x16x16xf32>
    %66 = arith.mulf %65, %64 : vector<2x16x16xf32>
    %c11 = arith.constant 11 : index
    %67 = memref.load %arg0[%c11] : memref<36xf32, #tpu.memory_space<smem>>
    %68 = vector.extract_strided_slice %0 {offsets = [0, 1, 0, 0], sizes = [2, 1, 16, 16], strides = [1, 1, 1, 1]} : vector<2x4x16x16xf32> to vector<2x1x16x16xf32>
    %69 = vector.shape_cast %68 : vector<2x1x16x16xf32> to vector<2x16x16xf32>
    %70 = vector.broadcast %67 : f32 to vector<2x16x16xf32>
    %71 = arith.mulf %70, %69 : vector<2x16x16xf32>
    %72 = arith.addf %66, %71 : vector<2x16x16xf32>
    %c20 = arith.constant 20 : index
    %73 = memref.load %arg0[%c20] : memref<36xf32, #tpu.memory_space<smem>>
    %74 = vector.extract_strided_slice %0 {offsets = [0, 2, 0, 0], sizes = [2, 1, 16, 16], strides = [1, 1, 1, 1]} : vector<2x4x16x16xf32> to vector<2x1x16x16xf32>
    %75 = vector.shape_cast %74 : vector<2x1x16x16xf32> to vector<2x16x16xf32>
    %76 = vector.broadcast %73 : f32 to vector<2x16x16xf32>
    %77 = arith.mulf %76, %75 : vector<2x16x16xf32>
    %78 = arith.addf %72, %77 : vector<2x16x16xf32>
    %c29 = arith.constant 29 : index
    %79 = memref.load %arg0[%c29] : memref<36xf32, #tpu.memory_space<smem>>
    %80 = vector.extract_strided_slice %0 {offsets = [0, 3, 0, 0], sizes = [2, 1, 16, 16], strides = [1, 1, 1, 1]} : vector<2x4x16x16xf32> to vector<2x1x16x16xf32>
    %81 = vector.shape_cast %80 : vector<2x1x16x16xf32> to vector<2x16x16xf32>
    %82 = vector.broadcast %79 : f32 to vector<2x16x16xf32>
    %83 = arith.mulf %82, %81 : vector<2x16x16xf32>
    %84 = arith.addf %78, %83 : vector<2x16x16xf32>
    %c15_i32 = arith.constant 15 : i32
    %85 = tpu.dynamic_rotate %84 by %c15_i32 dim 2 : vector<2x16x16xf32>, i32 -> vector<2x16x16xf32>
    %c15_i32_8 = arith.constant 15 : i32
    %86 = vector.broadcast %c15_i32_8 : i32 to vector<2x16x16xi32>
    %87 = arith.cmpi slt, %1, %86 : vector<2x16x16xi32>
    %cst_9 = arith.constant 0.000000e+00 : f32
    %88 = vector.broadcast %cst_9 : f32 to vector<2x16x16xf32>
    %89 = arith.select %87, %85, %88 : vector<2x16x16xi1>, vector<2x16x16xf32>
    %cst_10 = arith.constant 0.000000e+00 : f32
    %90 = vector.broadcast %cst_10 : f32 to vector<2x1x16xf32>
    %91 = vector.extract_strided_slice %89 {offsets = [0, 0, 0], sizes = [2, 15, 16], strides = [1, 1, 1]} : vector<2x16x16xf32> to vector<2x15x16xf32>
    %92 = tpu.concatenate %90, %91 in 1 : vector<2x1x16xf32>, vector<2x15x16xf32> -> vector<2x16x16xf32>
    %93 = arith.addf %61, %92 : vector<2x16x16xf32>
    %c3 = arith.constant 3 : index
    %94 = memref.load %arg0[%c3] : memref<36xf32, #tpu.memory_space<smem>>
    %95 = vector.extract_strided_slice %0 {offsets = [0, 0, 0, 0], sizes = [2, 1, 16, 16], strides = [1, 1, 1, 1]} : vector<2x4x16x16xf32> to vector<2x1x16x16xf32>
    %96 = vector.shape_cast %95 : vector<2x1x16x16xf32> to vector<2x16x16xf32>
    %97 = vector.broadcast %94 : f32 to vector<2x16x16xf32>
    %98 = arith.mulf %97, %96 : vector<2x16x16xf32>
    %c12 = arith.constant 12 : index
    %99 = memref.load %arg0[%c12] : memref<36xf32, #tpu.memory_space<smem>>
    %100 = vector.extract_strided_slice %0 {offsets = [0, 1, 0, 0], sizes = [2, 1, 16, 16], strides = [1, 1, 1, 1]} : vector<2x4x16x16xf32> to vector<2x1x16x16xf32>
    %101 = vector.shape_cast %100 : vector<2x1x16x16xf32> to vector<2x16x16xf32>
    %102 = vector.broadcast %99 : f32 to vector<2x16x16xf32>
    %103 = arith.mulf %102, %101 : vector<2x16x16xf32>
    %104 = arith.addf %98, %103 : vector<2x16x16xf32>
    %c21 = arith.constant 21 : index
    %105 = memref.load %arg0[%c21] : memref<36xf32, #tpu.memory_space<smem>>
    %106 = vector.extract_strided_slice %0 {offsets = [0, 2, 0, 0], sizes = [2, 1, 16, 16], strides = [1, 1, 1, 1]} : vector<2x4x16x16xf32> to vector<2x1x16x16xf32>
    %107 = vector.shape_cast %106 : vector<2x1x16x16xf32> to vector<2x16x16xf32>
    %108 = vector.broadcast %105 : f32 to vector<2x16x16xf32>
    %109 = arith.mulf %108, %107 : vector<2x16x16xf32>
    %110 = arith.addf %104, %109 : vector<2x16x16xf32>
    %c30 = arith.constant 30 : index
    %111 = memref.load %arg0[%c30] : memref<36xf32, #tpu.memory_space<smem>>
    %112 = vector.extract_strided_slice %0 {offsets = [0, 3, 0, 0], sizes = [2, 1, 16, 16], strides = [1, 1, 1, 1]} : vector<2x4x16x16xf32> to vector<2x1x16x16xf32>
    %113 = vector.shape_cast %112 : vector<2x1x16x16xf32> to vector<2x16x16xf32>
    %114 = vector.broadcast %111 : f32 to vector<2x16x16xf32>
    %115 = arith.mulf %114, %113 : vector<2x16x16xf32>
    %116 = arith.addf %110, %115 : vector<2x16x16xf32>
    %c1_i32_11 = arith.constant 1 : i32
    %117 = tpu.dynamic_rotate %116 by %c1_i32_11 dim 2 : vector<2x16x16xf32>, i32 -> vector<2x16x16xf32>
    %c1_i32_12 = arith.constant 1 : i32
    %118 = vector.broadcast %c1_i32_12 : i32 to vector<2x16x16xi32>
    %119 = arith.cmpi sge, %1, %118 : vector<2x16x16xi32>
    %cst_13 = arith.constant 0.000000e+00 : f32
    %120 = vector.broadcast %cst_13 : f32 to vector<2x16x16xf32>
    %121 = arith.select %119, %117, %120 : vector<2x16x16xi1>, vector<2x16x16xf32>
    %122 = arith.addf %93, %121 : vector<2x16x16xf32>
    %c4 = arith.constant 4 : index
    %123 = memref.load %arg0[%c4] : memref<36xf32, #tpu.memory_space<smem>>
    %124 = vector.extract_strided_slice %0 {offsets = [0, 0, 0, 0], sizes = [2, 1, 16, 16], strides = [1, 1, 1, 1]} : vector<2x4x16x16xf32> to vector<2x1x16x16xf32>
    %125 = vector.shape_cast %124 : vector<2x1x16x16xf32> to vector<2x16x16xf32>
    %126 = vector.broadcast %123 : f32 to vector<2x16x16xf32>
    %127 = arith.mulf %126, %125 : vector<2x16x16xf32>
    %c13 = arith.constant 13 : index
    %128 = memref.load %arg0[%c13] : memref<36xf32, #tpu.memory_space<smem>>
    %129 = vector.extract_strided_slice %0 {offsets = [0, 1, 0, 0], sizes = [2, 1, 16, 16], strides = [1, 1, 1, 1]} : vector<2x4x16x16xf32> to vector<2x1x16x16xf32>
    %130 = vector.shape_cast %129 : vector<2x1x16x16xf32> to vector<2x16x16xf32>
    %131 = vector.broadcast %128 : f32 to vector<2x16x16xf32>
    %132 = arith.mulf %131, %130 : vector<2x16x16xf32>
    %133 = arith.addf %127, %132 : vector<2x16x16xf32>
    %c22 = arith.constant 22 : index
    %134 = memref.load %arg0[%c22] : memref<36xf32, #tpu.memory_space<smem>>
    %135 = vector.extract_strided_slice %0 {offsets = [0, 2, 0, 0], sizes = [2, 1, 16, 16], strides = [1, 1, 1, 1]} : vector<2x4x16x16xf32> to vector<2x1x16x16xf32>
    %136 = vector.shape_cast %135 : vector<2x1x16x16xf32> to vector<2x16x16xf32>
    %137 = vector.broadcast %134 : f32 to vector<2x16x16xf32>
    %138 = arith.mulf %137, %136 : vector<2x16x16xf32>
    %139 = arith.addf %133, %138 : vector<2x16x16xf32>
    %c31 = arith.constant 31 : index
    %140 = memref.load %arg0[%c31] : memref<36xf32, #tpu.memory_space<smem>>
    %141 = vector.extract_strided_slice %0 {offsets = [0, 3, 0, 0], sizes = [2, 1, 16, 16], strides = [1, 1, 1, 1]} : vector<2x4x16x16xf32> to vector<2x1x16x16xf32>
    %142 = vector.shape_cast %141 : vector<2x1x16x16xf32> to vector<2x16x16xf32>
    %143 = vector.broadcast %140 : f32 to vector<2x16x16xf32>
    %144 = arith.mulf %143, %142 : vector<2x16x16xf32>
    %145 = arith.addf %139, %144 : vector<2x16x16xf32>
    %146 = arith.addf %122, %145 : vector<2x16x16xf32>
    %c5 = arith.constant 5 : index
    %147 = memref.load %arg0[%c5] : memref<36xf32, #tpu.memory_space<smem>>
    %148 = vector.extract_strided_slice %0 {offsets = [0, 0, 0, 0], sizes = [2, 1, 16, 16], strides = [1, 1, 1, 1]} : vector<2x4x16x16xf32> to vector<2x1x16x16xf32>
    %149 = vector.shape_cast %148 : vector<2x1x16x16xf32> to vector<2x16x16xf32>
    %150 = vector.broadcast %147 : f32 to vector<2x16x16xf32>
    %151 = arith.mulf %150, %149 : vector<2x16x16xf32>
    %c14 = arith.constant 14 : index
    %152 = memref.load %arg0[%c14] : memref<36xf32, #tpu.memory_space<smem>>
    %153 = vector.extract_strided_slice %0 {offsets = [0, 1, 0, 0], sizes = [2, 1, 16, 16], strides = [1, 1, 1, 1]} : vector<2x4x16x16xf32> to vector<2x1x16x16xf32>
    %154 = vector.shape_cast %153 : vector<2x1x16x16xf32> to vector<2x16x16xf32>
    %155 = vector.broadcast %152 : f32 to vector<2x16x16xf32>
    %156 = arith.mulf %155, %154 : vector<2x16x16xf32>
    %157 = arith.addf %151, %156 : vector<2x16x16xf32>
    %c23 = arith.constant 23 : index
    %158 = memref.load %arg0[%c23] : memref<36xf32, #tpu.memory_space<smem>>
    %159 = vector.extract_strided_slice %0 {offsets = [0, 2, 0, 0], sizes = [2, 1, 16, 16], strides = [1, 1, 1, 1]} : vector<2x4x16x16xf32> to vector<2x1x16x16xf32>
    %160 = vector.shape_cast %159 : vector<2x1x16x16xf32> to vector<2x16x16xf32>
    %161 = vector.broadcast %158 : f32 to vector<2x16x16xf32>
    %162 = arith.mulf %161, %160 : vector<2x16x16xf32>
    %163 = arith.addf %157, %162 : vector<2x16x16xf32>
    %c32 = arith.constant 32 : index
    %164 = memref.load %arg0[%c32] : memref<36xf32, #tpu.memory_space<smem>>
    %165 = vector.extract_strided_slice %0 {offsets = [0, 3, 0, 0], sizes = [2, 1, 16, 16], strides = [1, 1, 1, 1]} : vector<2x4x16x16xf32> to vector<2x1x16x16xf32>
    %166 = vector.shape_cast %165 : vector<2x1x16x16xf32> to vector<2x16x16xf32>
    %167 = vector.broadcast %164 : f32 to vector<2x16x16xf32>
    %168 = arith.mulf %167, %166 : vector<2x16x16xf32>
    %169 = arith.addf %163, %168 : vector<2x16x16xf32>
    %c15_i32_14 = arith.constant 15 : i32
    %170 = tpu.dynamic_rotate %169 by %c15_i32_14 dim 2 : vector<2x16x16xf32>, i32 -> vector<2x16x16xf32>
    %c15_i32_15 = arith.constant 15 : i32
    %171 = vector.broadcast %c15_i32_15 : i32 to vector<2x16x16xi32>
    %172 = arith.cmpi slt, %1, %171 : vector<2x16x16xi32>
    %cst_16 = arith.constant 0.000000e+00 : f32
    %173 = vector.broadcast %cst_16 : f32 to vector<2x16x16xf32>
    %174 = arith.select %172, %170, %173 : vector<2x16x16xi1>, vector<2x16x16xf32>
    %175 = arith.addf %146, %174 : vector<2x16x16xf32>
    %c6 = arith.constant 6 : index
    %176 = memref.load %arg0[%c6] : memref<36xf32, #tpu.memory_space<smem>>
    %177 = vector.extract_strided_slice %0 {offsets = [0, 0, 0, 0], sizes = [2, 1, 16, 16], strides = [1, 1, 1, 1]} : vector<2x4x16x16xf32> to vector<2x1x16x16xf32>
    %178 = vector.shape_cast %177 : vector<2x1x16x16xf32> to vector<2x16x16xf32>
    %179 = vector.broadcast %176 : f32 to vector<2x16x16xf32>
    %180 = arith.mulf %179, %178 : vector<2x16x16xf32>
    %c15 = arith.constant 15 : index
    %181 = memref.load %arg0[%c15] : memref<36xf32, #tpu.memory_space<smem>>
    %182 = vector.extract_strided_slice %0 {offsets = [0, 1, 0, 0], sizes = [2, 1, 16, 16], strides = [1, 1, 1, 1]} : vector<2x4x16x16xf32> to vector<2x1x16x16xf32>
    %183 = vector.shape_cast %182 : vector<2x1x16x16xf32> to vector<2x16x16xf32>
    %184 = vector.broadcast %181 : f32 to vector<2x16x16xf32>
    %185 = arith.mulf %184, %183 : vector<2x16x16xf32>
    %186 = arith.addf %180, %185 : vector<2x16x16xf32>
    %c24 = arith.constant 24 : index
    %187 = memref.load %arg0[%c24] : memref<36xf32, #tpu.memory_space<smem>>
    %188 = vector.extract_strided_slice %0 {offsets = [0, 2, 0, 0], sizes = [2, 1, 16, 16], strides = [1, 1, 1, 1]} : vector<2x4x16x16xf32> to vector<2x1x16x16xf32>
    %189 = vector.shape_cast %188 : vector<2x1x16x16xf32> to vector<2x16x16xf32>
    %190 = vector.broadcast %187 : f32 to vector<2x16x16xf32>
    %191 = arith.mulf %190, %189 : vector<2x16x16xf32>
    %192 = arith.addf %186, %191 : vector<2x16x16xf32>
    %c33 = arith.constant 33 : index
    %193 = memref.load %arg0[%c33] : memref<36xf32, #tpu.memory_space<smem>>
    %194 = vector.extract_strided_slice %0 {offsets = [0, 3, 0, 0], sizes = [2, 1, 16, 16], strides = [1, 1, 1, 1]} : vector<2x4x16x16xf32> to vector<2x1x16x16xf32>
    %195 = vector.shape_cast %194 : vector<2x1x16x16xf32> to vector<2x16x16xf32>
    %196 = vector.broadcast %193 : f32 to vector<2x16x16xf32>
    %197 = arith.mulf %196, %195 : vector<2x16x16xf32>
    %198 = arith.addf %192, %197 : vector<2x16x16xf32>
    %c1_i32_17 = arith.constant 1 : i32
    %199 = tpu.dynamic_rotate %198 by %c1_i32_17 dim 2 : vector<2x16x16xf32>, i32 -> vector<2x16x16xf32>
    %c1_i32_18 = arith.constant 1 : i32
    %200 = vector.broadcast %c1_i32_18 : i32 to vector<2x16x16xi32>
    %201 = arith.cmpi sge, %1, %200 : vector<2x16x16xi32>
    %cst_19 = arith.constant 0.000000e+00 : f32
    %202 = vector.broadcast %cst_19 : f32 to vector<2x16x16xf32>
    %203 = arith.select %201, %199, %202 : vector<2x16x16xi1>, vector<2x16x16xf32>
    %cst_20 = arith.constant 0.000000e+00 : f32
    %204 = vector.broadcast %cst_20 : f32 to vector<2x1x16xf32>
    %205 = vector.extract_strided_slice %203 {offsets = [0, 1, 0], sizes = [2, 15, 16], strides = [1, 1, 1]} : vector<2x16x16xf32> to vector<2x15x16xf32>
    %206 = tpu.concatenate %205, %204 in 1 : vector<2x15x16xf32>, vector<2x1x16xf32> -> vector<2x16x16xf32>
    %207 = arith.addf %175, %206 : vector<2x16x16xf32>
    %c7 = arith.constant 7 : index
    %208 = memref.load %arg0[%c7] : memref<36xf32, #tpu.memory_space<smem>>
    %209 = vector.extract_strided_slice %0 {offsets = [0, 0, 0, 0], sizes = [2, 1, 16, 16], strides = [1, 1, 1, 1]} : vector<2x4x16x16xf32> to vector<2x1x16x16xf32>
    %210 = vector.shape_cast %209 : vector<2x1x16x16xf32> to vector<2x16x16xf32>
    %211 = vector.broadcast %208 : f32 to vector<2x16x16xf32>
    %212 = arith.mulf %211, %210 : vector<2x16x16xf32>
    %c16 = arith.constant 16 : index
    %213 = memref.load %arg0[%c16] : memref<36xf32, #tpu.memory_space<smem>>
    %214 = vector.extract_strided_slice %0 {offsets = [0, 1, 0, 0], sizes = [2, 1, 16, 16], strides = [1, 1, 1, 1]} : vector<2x4x16x16xf32> to vector<2x1x16x16xf32>
    %215 = vector.shape_cast %214 : vector<2x1x16x16xf32> to vector<2x16x16xf32>
    %216 = vector.broadcast %213 : f32 to vector<2x16x16xf32>
    %217 = arith.mulf %216, %215 : vector<2x16x16xf32>
    %218 = arith.addf %212, %217 : vector<2x16x16xf32>
    %c25 = arith.constant 25 : index
    %219 = memref.load %arg0[%c25] : memref<36xf32, #tpu.memory_space<smem>>
    %220 = vector.extract_strided_slice %0 {offsets = [0, 2, 0, 0], sizes = [2, 1, 16, 16], strides = [1, 1, 1, 1]} : vector<2x4x16x16xf32> to vector<2x1x16x16xf32>
    %221 = vector.shape_cast %220 : vector<2x1x16x16xf32> to vector<2x16x16xf32>
    %222 = vector.broadcast %219 : f32 to vector<2x16x16xf32>
    %223 = arith.mulf %222, %221 : vector<2x16x16xf32>
    %224 = arith.addf %218, %223 : vector<2x16x16xf32>
    %c34 = arith.constant 34 : index
    %225 = memref.load %arg0[%c34] : memref<36xf32, #tpu.memory_space<smem>>
    %226 = vector.extract_strided_slice %0 {offsets = [0, 3, 0, 0], sizes = [2, 1, 16, 16], strides = [1, 1, 1, 1]} : vector<2x4x16x16xf32> to vector<2x1x16x16xf32>
    %227 = vector.shape_cast %226 : vector<2x1x16x16xf32> to vector<2x16x16xf32>
    %228 = vector.broadcast %225 : f32 to vector<2x16x16xf32>
    %229 = arith.mulf %228, %227 : vector<2x16x16xf32>
    %230 = arith.addf %224, %229 : vector<2x16x16xf32>
    %cst_21 = arith.constant 0.000000e+00 : f32
    %231 = vector.broadcast %cst_21 : f32 to vector<2x1x16xf32>
    %232 = vector.extract_strided_slice %230 {offsets = [0, 1, 0], sizes = [2, 15, 16], strides = [1, 1, 1]} : vector<2x16x16xf32> to vector<2x15x16xf32>
    %233 = tpu.concatenate %232, %231 in 1 : vector<2x15x16xf32>, vector<2x1x16xf32> -> vector<2x16x16xf32>
    %234 = arith.addf %207, %233 : vector<2x16x16xf32>
    %c8 = arith.constant 8 : index
    %235 = memref.load %arg0[%c8] : memref<36xf32, #tpu.memory_space<smem>>
    %236 = vector.extract_strided_slice %0 {offsets = [0, 0, 0, 0], sizes = [2, 1, 16, 16], strides = [1, 1, 1, 1]} : vector<2x4x16x16xf32> to vector<2x1x16x16xf32>
    %237 = vector.shape_cast %236 : vector<2x1x16x16xf32> to vector<2x16x16xf32>
    %238 = vector.broadcast %235 : f32 to vector<2x16x16xf32>
    %239 = arith.mulf %238, %237 : vector<2x16x16xf32>
    %c17 = arith.constant 17 : index
    %240 = memref.load %arg0[%c17] : memref<36xf32, #tpu.memory_space<smem>>
    %241 = vector.extract_strided_slice %0 {offsets = [0, 1, 0, 0], sizes = [2, 1, 16, 16], strides = [1, 1, 1, 1]} : vector<2x4x16x16xf32> to vector<2x1x16x16xf32>
    %242 = vector.shape_cast %241 : vector<2x1x16x16xf32> to vector<2x16x16xf32>
    %243 = vector.broadcast %240 : f32 to vector<2x16x16xf32>
    %244 = arith.mulf %243, %242 : vector<2x16x16xf32>
    %245 = arith.addf %239, %244 : vector<2x16x16xf32>
    %c26 = arith.constant 26 : index
    %246 = memref.load %arg0[%c26] : memref<36xf32, #tpu.memory_space<smem>>
    %247 = vector.extract_strided_slice %0 {offsets = [0, 2, 0, 0], sizes = [2, 1, 16, 16], strides = [1, 1, 1, 1]} : vector<2x4x16x16xf32> to vector<2x1x16x16xf32>
    %248 = vector.shape_cast %247 : vector<2x1x16x16xf32> to vector<2x16x16xf32>
    %249 = vector.broadcast %246 : f32 to vector<2x16x16xf32>
    %250 = arith.mulf %249, %248 : vector<2x16x16xf32>
    %251 = arith.addf %245, %250 : vector<2x16x16xf32>
    %c35 = arith.constant 35 : index
    %252 = memref.load %arg0[%c35] : memref<36xf32, #tpu.memory_space<smem>>
    %253 = vector.extract_strided_slice %0 {offsets = [0, 3, 0, 0], sizes = [2, 1, 16, 16], strides = [1, 1, 1, 1]} : vector<2x4x16x16xf32> to vector<2x1x16x16xf32>
    %254 = vector.shape_cast %253 : vector<2x1x16x16xf32> to vector<2x16x16xf32>
    %255 = vector.broadcast %252 : f32 to vector<2x16x16xf32>
    %256 = arith.mulf %255, %254 : vector<2x16x16xf32>
    %257 = arith.addf %251, %256 : vector<2x16x16xf32>
    %c15_i32_22 = arith.constant 15 : i32
    %258 = tpu.dynamic_rotate %257 by %c15_i32_22 dim 2 : vector<2x16x16xf32>, i32 -> vector<2x16x16xf32>
    %c15_i32_23 = arith.constant 15 : i32
    %259 = vector.broadcast %c15_i32_23 : i32 to vector<2x16x16xi32>
    %260 = arith.cmpi slt, %1, %259 : vector<2x16x16xi32>
    %cst_24 = arith.constant 0.000000e+00 : f32
    %261 = vector.broadcast %cst_24 : f32 to vector<2x16x16xf32>
    %262 = arith.select %260, %258, %261 : vector<2x16x16xi1>, vector<2x16x16xf32>
    %cst_25 = arith.constant 0.000000e+00 : f32
    %263 = vector.broadcast %cst_25 : f32 to vector<2x1x16xf32>
    %264 = vector.extract_strided_slice %262 {offsets = [0, 1, 0], sizes = [2, 15, 16], strides = [1, 1, 1]} : vector<2x16x16xf32> to vector<2x15x16xf32>
    %265 = tpu.concatenate %264, %263 in 1 : vector<2x15x16xf32>, vector<2x1x16xf32> -> vector<2x16x16xf32>
    %266 = arith.addf %234, %265 : vector<2x16x16xf32>
    %c1_26 = arith.constant 1 : index
    %267 = memref.load %arg1[%c1_26] : memref<3xf32, #tpu.memory_space<smem>>
    %c2_27 = arith.constant 2 : index
    %268 = memref.load %arg1[%c2_27] : memref<3xf32, #tpu.memory_space<smem>>
    %269 = vector.shape_cast %266 : vector<2x16x16xf32> to vector<1x2x16x16xf32>
    %cst_28 = arith.constant dense<0.000000e+00> : vector<1xf32>
    %270 = vector.multi_reduction <add>, %269, %cst_28 [1, 2, 3] : vector<1x2x16x16xf32> to vector<1xf32>
    %271 = vector.shape_cast %270 : vector<1xf32> to vector<1x1x1x1xf32>
    %272 = vector.extract %271[0, 0, 0, 0] : f32 from vector<1x1x1x1xf32>
    %cst_29 = arith.constant 5.120000e+02 : f32
    %273 = arith.divf %272, %cst_29 : f32
    %274 = vector.broadcast %273 : f32 to vector<2x16x16xf32>
    %275 = arith.subf %266, %274 : vector<2x16x16xf32>
    %276 = arith.mulf %275, %275 : vector<2x16x16xf32>
    %277 = vector.shape_cast %276 : vector<2x16x16xf32> to vector<1x2x16x16xf32>
    %cst_30 = arith.constant dense<0.000000e+00> : vector<1xf32>
    %278 = vector.multi_reduction <add>, %277, %cst_30 [1, 2, 3] : vector<1x2x16x16xf32> to vector<1xf32>
    %279 = vector.shape_cast %278 : vector<1xf32> to vector<1x1x1x1xf32>
    %280 = vector.extract %279[0, 0, 0, 0] : f32 from vector<1x1x1x1xf32>
    %cst_31 = arith.constant 5.120000e+02 : f32
    %281 = arith.divf %280, %cst_31 : f32
    %cst_32 = arith.constant 9.99999974E-6 : f32
    %282 = arith.addf %281, %cst_32 : f32
    %283 = math.rsqrt %282 : f32
    %284 = arith.mulf %267, %283 : f32
    %285 = arith.mulf %273, %284 : f32
    %286 = arith.subf %268, %285 : f32
    %287 = vector.broadcast %284 : f32 to vector<2x16x16xf32>
    %288 = arith.mulf %266, %287 : vector<2x16x16xf32>
    %289 = vector.broadcast %286 : f32 to vector<2x16x16xf32>
    %290 = arith.addf %288, %289 : vector<2x16x16xf32>
    %cst_33 = arith.constant 0.000000e+00 : f32
    %291 = vector.broadcast %cst_33 : f32 to vector<2x16x16xf32>
    %292 = arith.maximumf %290, %291 : vector<2x16x16xf32>
    %293 = arith.negf %292 : vector<2x16x16xf32>
    %294 = math.exp %293 : vector<2x16x16xf32>
    %cst_34 = arith.constant 1.000000e+00 : f32
    %295 = vector.broadcast %cst_34 : f32 to vector<2x16x16xf32>
    %296 = arith.addf %295, %294 : vector<2x16x16xf32>
    %297 = arith.divf %295, %296 : vector<2x16x16xf32>
    %c0_35 = arith.constant 0 : index
    %c0_36 = arith.constant 0 : index
    %c0_37 = arith.constant 0 : index
    %298 = vector.load %arg3[%c0_35, %c0_36, %c0_37] : memref<2x16x16xf32, #tpu.memory_space<vmem>>, vector<2x16x16xf32>
    tpu.vector_store %arg3[%c0_35, %c0_36, %c0_37], %297 {strides = array<i32>} : memref<2x16x16xf32, #tpu.memory_space<vmem>>, vector<2x16x16xf32>,
    return
  }
}

</mosaic_0001>

<llo_original>
// kernel: debugnet_forward.1
$region0: #{debugnet_forward.1}
  #allocation0 [shape = 'u32[]', space=smem, size = 0x4, offset = 0x4, fixed_abs, tag = 'smem constant byte address 0x4 - core index']
  #allocation1 [shape = 'u32[144,128]{1,0:T(1,128)}', space=vmem, size = 0x12000, scoped, tag = 'internal scratch']
  %s0 = inlined_call_operand.vmem [shape: f32[36], index: 0, kind: input, shape index: {}]
  %s1 = inlined_call_operand.vmem [shape: f32[3], index: 1, kind: input, shape index: {}]
  %s2 = inlined_call_operand.hbm [shape: f32[2,4,16,16], index: 2, kind: input, shape index: {}]
  %s3 = inlined_call_operand.hbm [shape: f32[2,16,16], index: 3, kind: output, shape index: {}]
  %s4 = sld [smem:[#allocation0]]
  $region34: #{debugnet_forward.1} parent=0
    _
  %s6 = ssub.s32 1, %s4
  %s7 = scalar_select 0, %s6, %s4
  $region1: #{debugnet_forward.1} parent=0
    #allocation2 [shape = 'u8[512]{0}', space=smem, size = 0x200, scoped, tag = 'input window, operand 0, single buffered']
    #allocation3 [shape = 's32[1]{0}', space=sflag, size = 0x4, scoped, tag = 'scoped memory for debugnet_forward.1']
    #allocation4 [shape = 's32[1]{0}', space=sflag, size = 0x4, scoped, tag = 'scoped memory for debugnet_forward.1']
    #allocation5 [shape = 's32[1]{0}', space=sflag, size = 0x4, scoped, tag = 'scoped memory for debugnet_forward.1']
    #allocation6 [shape = 'u8[512]{0}', space=smem, size = 0x200, scoped, tag = 'input window, operand 1, single buffered']
    #allocation7 [shape = 's32[1]{0}', space=sflag, size = 0x4, scoped, tag = 'scoped memory for debugnet_forward.1']
    #allocation8 [shape = 'u8[65536]{0}', space=vmem, size = 0x10000, scoped, tag = 'input window, operand 2, single buffered']
    #allocation9 [shape = 'u8[16384]{0}', space=vmem, size = 0x4000, scoped, tag = 'output window, operand 0, single buffered']
    %8 = vsyncpa [#allocation5], 0
    %9 = vsyncpa [#allocation7], 0
    %10 = vsyncpa [#allocation3], 0
    %11 = vsyncpa [#allocation4], 0
    // Predicated region
    $region2: #{debugnet_forward.1} parent=1 // pred_check
      _
    $region3: #{debugnet_forward.1} parent=1 // pred_check_branch
      %13 = sbr.rel (0) target = $region5
    $region4: #{debugnet_forward.1} parent=1 // pred_region
      %s15 = ssub.s32 16, 16
      %16 = vsyncadd [#allocation5], %s15
      %s18 = sshll.u32 %s0, 4
      %s19 = int_to_ptr.vmem [resolvable:$true] %s18
      %21 = dma.vmem_to_smem %s19, 16, [#allocation2], [#allocation5]
    $region5: #{debugnet_forward.1} parent=1 // pred_fallthru
      _
    // Predicated region
    $region6: #{debugnet_forward.1} parent=1 // pred_check
      _
    $region7: #{debugnet_forward.1} parent=1 // pred_check_branch
      %23 = sbr.rel (0) target = $region9
    $region8: #{debugnet_forward.1} parent=1 // pred_region
      %s25 = ssub.s32 16, 16
      %26 = vsyncadd [#allocation7], %s25
      %s28 = sshll.u32 %s1, 4
      %s29 = int_to_ptr.vmem [resolvable:$true] %s28
      %31 = dma.vmem_to_smem %s29, 16, [#allocation6], [#allocation7]
    $region9: #{debugnet_forward.1} parent=1 // pred_fallthru
      _
    // Predicated region
    $region10: #{debugnet_forward.1} parent=1 // pred_check
      _
    $region11: #{debugnet_forward.1} parent=1 // pred_check_branch
      %33 = sbr.rel (0) target = $region13
    $region12: #{debugnet_forward.1} parent=1 // pred_region
      %s35 = ssub.s32 2048, 2048
      %36 = vsyncadd [#allocation3], %s35
      %s37 = sshll.u32 [#allocation8], 4
      %s38 = int_to_ptr.vmem [resolvable:$true] %s37
      %43 = dma.hbm_to_vmem [thread:$0]  %s2, 2048, %s38, [#allocation3], 128, 128, 8
    $region13: #{debugnet_forward.1} parent=1 // pred_fallthru
      _
    // Predicated region
    $region14: #{debugnet_forward.1} parent=1 // pred_check
      _
    $region15: #{debugnet_forward.1} parent=1 // pred_check_branch
      %45 = sbr.rel (0) target = $region17
    $region16: #{debugnet_forward.1} parent=1 // pred_region
      %46 = dma.done [#allocation5], 16
    $region17: #{debugnet_forward.1} parent=1 // pred_fallthru
      _
    // Predicated region
    $region18: #{debugnet_forward.1} parent=1 // pred_check
      _
    $region19: #{debugnet_forward.1} parent=1 // pred_check_branch
      %48 = sbr.rel (0) target = $region21
    $region20: #{debugnet_forward.1} parent=1 // pred_region
      %49 = dma.done [#allocation7], 16
    $region21: #{debugnet_forward.1} parent=1 // pred_fallthru
      _
    // Predicated region
    $region22: #{debugnet_forward.1} parent=1 // pred_check
      _
    $region23: #{debugnet_forward.1} parent=1 // pred_check_branch
      %51 = sbr.rel (0) target = $region25
    $region24: #{debugnet_forward.1} parent=1 // pred_region
      %52 = dma.done [#allocation3], 2048
    $region25: #{debugnet_forward.1} parent=1 // pred_fallthru
      _
    %53 = sfence
    %v54 = vld [vmem:[#allocation8] sm:$0xff]
    %v55 = vld [vmem:[#allocation8 + $0x8] sm:$0xff]
    %v56 = vld [vmem:[#allocation8 + $0x10] sm:$0xff]
    %v57 = vld [vmem:[#allocation8 + $0x18] sm:$0xff]
    %v58 = vld [vmem:[#allocation8 + $0x20] sm:$0xff]
    %v59 = vld [vmem:[#allocation8 + $0x28] sm:$0xff]
    %v60 = vld [vmem:[#allocation8 + $0x30] sm:$0xff]
    %v61 = vld [vmem:[#allocation8 + $0x38] sm:$0xff]
    %v62 = vld [vmem:[#allocation8 + $0x40] sm:$0xff]
    %v63 = vld [vmem:[#allocation8 + $0x48] sm:$0xff]
    %v64 = vld [vmem:[#allocation8 + $0x50] sm:$0xff]
    %v65 = vld [vmem:[#allocation8 + $0x58] sm:$0xff]
    %v66 = vld [vmem:[#allocation8 + $0x60] sm:$0xff]
    %v67 = vld [vmem:[#allocation8 + $0x68] sm:$0xff]
    %v68 = vld [vmem:[#allocation8 + $0x70] sm:$0xff]
    %v69 = vld [vmem:[#allocation8 + $0x78] sm:$0xff]
    %v70 = vlaneseq
    %v71 = vand.u32 %v70, 127
    %s72 = sld [smem:[#allocation2]]
    %v73 = vstv %s72
    %v74 = vmul.f32 %v73, %v54
    %v75 = vmul.f32 %v73, %v55
    %v76 = vmul.f32 %v73, %v62
    %v77 = vmul.f32 %v73, %v63
    %s78 = sld [smem:[#allocation2 + $0x9]]
    %v79 = vstv %s78
    %v80 = vmul.f32 %v79, %v56
    %v81 = vmul.f32 %v79, %v57
    %v82 = vmul.f32 %v79, %v64
    %v83 = vmul.f32 %v79, %v65
    %v84 = vadd.f32 %v74, %v80
    %v85 = vadd.f32 %v75, %v81
    %v86 = vadd.f32 %v76, %v82
    %v87 = vadd.f32 %v77, %v83
    %s88 = sld [smem:[#allocation2 + $0x12]]
    %v89 = vstv %s88
    %v90 = vmul.f32 %v89, %v58
    %v91 = vmul.f32 %v89, %v59
    %v92 = vmul.f32 %v89, %v66
    %v93 = vmul.f32 %v89, %v67
    %v94 = vadd.f32 %v84, %v90
    %v95 = vadd.f32 %v85, %v91
    %v96 = vadd.f32 %v86, %v92
    %v97 = vadd.f32 %v87, %v93
    %s98 = sld [smem:[#allocation2 + $0x1b]]
    %v99 = vstv %s98
    %v100 = vmul.f32 %v99, %v60
    %v101 = vmul.f32 %v99, %v61
    %v102 = vmul.f32 %v99, %v68
    %v103 = vmul.f32 %v99, %v69
    %v104 = vadd.f32 %v94, %v100
    %v105 = vadd.f32 %v95, %v101
    %v106 = vadd.f32 %v96, %v102
    %v107 = vadd.f32 %v97, %v103
    %vm108 = vcmask 1047680
    %109 = vrot.lane.b32.xlu0 %v104, 16
    %v110 = vpop.permute.xlu0 %109
    %v111 = vsel %vm108, %v110, %v104
    %112 = vrot.lane.b32.xlu0 %v105, 16
    %v113 = vpop.permute.xlu0 %112
    %v114 = vsel %vm108, %v113, %v105
    %115 = vrot.lane.b32.xlu0 %v106, 16
    %v116 = vpop.permute.xlu0 %115
    %v117 = vsel %vm108, %v116, %v106
    %118 = vrot.lane.b32.xlu0 %v107, 16
    %v119 = vpop.permute.xlu0 %118
    %v120 = vsel %vm108, %v119, %v107
    %121 = vrot.lane.b32.xlu0 %v111, 16
    %v122 = vpop.permute.xlu0 %121
    %123 = vrot.lane.b32.xlu0 %v114, 16
    %v124 = vpop.permute.xlu0 %123
    %125 = vrot.lane.b32.xlu0 %v117, 16
    %v126 = vpop.permute.xlu0 %125
    %127 = vrot.lane.b32.xlu0 %v120, 16
    %v128 = vpop.permute.xlu0 %127
    %v129 = vsel %vm108, %v122, %v104
    %v130 = vsel %vm108, %v124, %v105
    %v131 = vsel %vm108, %v126, %v106
    %v132 = vsel %vm108, %v128, %v107
    %vm133 = vcmp.ge.s32.totalorder %v71, 1
    %138 = vrot.lane.b32.xlu0 %v129, 113
    %v139 = vpop.permute.xlu0 %138
    %140 = vrot.lane.b32.xlu0 %v130, 113
    %v141 = vpop.permute.xlu0 %140
    %142 = vrot.lane.b32.xlu0 %v131, 113
    %v143 = vpop.permute.xlu0 %142
    %144 = vrot.lane.b32.xlu0 %v132, 113
    %v145 = vpop.permute.xlu0 %144
    %v150 = vsel %vm133, %v139, 0.0
    %v151 = vsel %vm133, %v141, 0.0
    %v152 = vsel %vm133, %v143, 0.0
    %v153 = vsel %vm133, %v145, 0.0
    %vm158 = vcmask 1040384
    %v159 = vrot.slane %v150, 7
    %v160 = vrot.slane %v151, 7
    %v161 = vsel %vm158, %v159, %v160
    %v162 = vrot.slane %v152, 7
    %v163 = vrot.slane %v153, 7
    %v164 = vsel %vm158, %v162, %v163
    %v169 = vsel %vm158, 0.0, %v159
    %v170 = vsel %vm158, 0.0, %v162
    %v171 = vadd.f32 %v169, 0.0
    %v172 = vadd.f32 %v161, 0.0
    %v173 = vadd.f32 %v170, 0.0
    %v174 = vadd.f32 %v164, 0.0
    %s175 = sld [smem:[#allocation2 + $0x1]]
    %v176 = vstv %s175
    %v177 = vmul.f32 %v176, %v54
    %v178 = vmul.f32 %v176, %v55
    %v179 = vmul.f32 %v176, %v62
    %v180 = vmul.f32 %v176, %v63
    %s181 = sld [smem:[#allocation2 + $0xa]]
    %v182 = vstv %s181
    %v183 = vmul.f32 %v182, %v56
    %v184 = vmul.f32 %v182, %v57
    %v185 = vmul.f32 %v182, %v64
    %v186 = vmul.f32 %v182, %v65
    %v187 = vadd.f32 %v177, %v183
    %v188 = vadd.f32 %v178, %v184
    %v189 = vadd.f32 %v179, %v185
    %v190 = vadd.f32 %v180, %v186
    %s191 = sld [smem:[#allocation2 + $0x13]]
    %v192 = vstv %s191
    %v193 = vmul.f32 %v192, %v58
    %v194 = vmul.f32 %v192, %v59
    %v195 = vmul.f32 %v192, %v66
    %v196 = vmul.f32 %v192, %v67
    %v197 = vadd.f32 %v187, %v193
    %v198 = vadd.f32 %v188, %v194
    %v199 = vadd.f32 %v189, %v195
    %v200 = vadd.f32 %v190, %v196
    %s201 = sld [smem:[#allocation2 + $0x1c]]
    %v202 = vstv %s201
    %v203 = vmul.f32 %v202, %v60
    %v204 = vmul.f32 %v202, %v61
    %v205 = vmul.f32 %v202, %v68
    %v206 = vmul.f32 %v202, %v69
    %v207 = vadd.f32 %v197, %v203
    %v208 = vadd.f32 %v198, %v204
    %v209 = vadd.f32 %v199, %v205
    %v210 = vadd.f32 %v200, %v206
    %v215 = vrot.slane %v207, 7
    %v216 = vrot.slane %v208, 7
    %v217 = vsel %vm158, %v215, %v216
    %v218 = vrot.slane %v209, 7
    %v219 = vrot.slane %v210, 7
    %v220 = vsel %vm158, %v218, %v219
    %v225 = vsel %vm158, 0.0, %v215
    %v226 = vsel %vm158, 0.0, %v218
    %v227 = vadd.f32 %v171, %v225
    %v228 = vadd.f32 %v172, %v217
    %v229 = vadd.f32 %v173, %v226
    %v230 = vadd.f32 %v174, %v220
    %s231 = sld [smem:[#allocation2 + $0x2]]
    %v232 = vstv %s231
    %v233 = vmul.f32 %v232, %v54
    %v234 = vmul.f32 %v232, %v55
    %v235 = vmul.f32 %v232, %v62
    %v236 = vmul.f32 %v232, %v63
    %s237 = sld [smem:[#allocation2 + $0xb]]
    %v238 = vstv %s237
    %v239 = vmul.f32 %v238, %v56
    %v240 = vmul.f32 %v238, %v57
    %v241 = vmul.f32 %v238, %v64
    %v242 = vmul.f32 %v238, %v65
    %v243 = vadd.f32 %v233, %v239
    %v244 = vadd.f32 %v234, %v240
    %v245 = vadd.f32 %v235, %v241
    %v246 = vadd.f32 %v236, %v242
    %s247 = sld [smem:[#allocation2 + $0x14]]
    %v248 = vstv %s247
    %v249 = vmul.f32 %v248, %v58
    %v250 = vmul.f32 %v248, %v59
    %v251 = vmul.f32 %v248, %v66
    %v252 = vmul.f32 %v248, %v67
    %v253 = vadd.f32 %v243, %v249
    %v254 = vadd.f32 %v244, %v250
    %v255 = vadd.f32 %v245, %v251
    %v256 = vadd.f32 %v246, %v252
    %s257 = sld [smem:[#allocation2 + $0x1d]]
    %v258 = vstv %s257
    %v259 = vmul.f32 %v258, %v60
    %v260 = vmul.f32 %v258, %v61
    %v261 = vmul.f32 %v258, %v68
    %v262 = vmul.f32 %v258, %v69
    %v263 = vadd.f32 %v253, %v259
    %v264 = vadd.f32 %v254, %v260
    %v265 = vadd.f32 %v255, %v261
    %v266 = vadd.f32 %v256, %v262
    %267 = vrot.lane.b32.xlu0 %v263, 16
    %v268 = vpop.permute.xlu0 %267
    %v269 = vsel %vm108, %v268, %v263
    %270 = vrot.lane.b32.xlu0 %v264, 16
    %v271 = vpop.permute.xlu0 %270
    %v272 = vsel %vm108, %v271, %v264
    %273 = vrot.lane.b32.xlu0 %v265, 16
    %v274 = vpop.permute.xlu0 %273
    %v275 = vsel %vm108, %v274, %v265
    %276 = vrot.lane.b32.xlu0 %v266, 16
    %v277 = vpop.permute.xlu0 %276
    %v278 = vsel %vm108, %v277, %v266
    %279 = vrot.lane.b32.xlu0 %v269, 16
    %v280 = vpop.permute.xlu0 %279
    %281 = vrot.lane.b32.xlu0 %v272, 16
    %v282 = vpop.permute.xlu0 %281
    %283 = vrot.lane.b32.xlu0 %v275, 16
    %v284 = vpop.permute.xlu0 %283
    %285 = vrot.lane.b32.xlu0 %v278, 16
    %v286 = vpop.permute.xlu0 %285
    %v287 = vsel %vm108, %v280, %v263
    %v288 = vsel %vm108, %v282, %v264
    %v289 = vsel %vm108, %v284, %v265
    %v290 = vsel %vm108, %v286, %v266
    %vm291 = vcmp.lt.s32.totalorder %v71, 15
    %296 = vrot.lane.b32.xlu0 %v287, 127
    %v297 = vpop.permute.xlu0 %296
    %298 = vrot.lane.b32.xlu0 %v288, 127
    %v299 = vpop.permute.xlu0 %298
    %300 = vrot.lane.b32.xlu0 %v289, 127
    %v301 = vpop.permute.xlu0 %300
    %302 = vrot.lane.b32.xlu0 %v290, 127
    %v303 = vpop.permute.xlu0 %302
    %v308 = vsel %vm291, %v297, 0.0
    %v309 = vsel %vm291, %v299, 0.0
    %v310 = vsel %vm291, %v301, 0.0
    %v311 = vsel %vm291, %v303, 0.0
    %v316 = vrot.slane %v308, 7
    %v317 = vrot.slane %v309, 7
    %v318 = vsel %vm158, %v316, %v317
    %v319 = vrot.slane %v310, 7
    %v320 = vrot.slane %v311, 7
    %v321 = vsel %vm158, %v319, %v320
    %v326 = vsel %vm158, 0.0, %v316
    %v327 = vsel %vm158, 0.0, %v319
    %v328 = vadd.f32 %v227, %v326
    %v329 = vadd.f32 %v228, %v318
    %v330 = vadd.f32 %v229, %v327
    %v331 = vadd.f32 %v230, %v321
    %s332 = sld [smem:[#allocation2 + $0x3]]
    %v333 = vstv %s332
    %v334 = vmul.f32 %v333, %v54
    %v335 = vmul.f32 %v333, %v55
    %v336 = vmul.f32 %v333, %v62
    %v337 = vmul.f32 %v333, %v63
    %s338 = sld [smem:[#allocation2 + $0xc]]
    %v339 = vstv %s338
    %v340 = vmul.f32 %v339, %v56
    %v341 = vmul.f32 %v339, %v57
    %v342 = vmul.f32 %v339, %v64
    %v343 = vmul.f32 %v339, %v65
    %v344 = vadd.f32 %v334, %v340
    %v345 = vadd.f32 %v335, %v341
    %v346 = vadd.f32 %v336, %v342
    %v347 = vadd.f32 %v337, %v343
    %s348 = sld [smem:[#allocation2 + $0x15]]
    %v349 = vstv %s348
    %v350 = vmul.f32 %v349, %v58
    %v351 = vmul.f32 %v349, %v59
    %v352 = vmul.f32 %v349, %v66
    %v353 = vmul.f32 %v349, %v67
    %v354 = vadd.f32 %v344, %v350
    %v355 = vadd.f32 %v345, %v351
    %v356 = vadd.f32 %v346, %v352
    %v357 = vadd.f32 %v347, %v353
    %s358 = sld [smem:[#allocation2 + $0x1e]]
    %v359 = vstv %s358
    %v360 = vmul.f32 %v359, %v60
    %v361 = vmul.f32 %v359, %v61
    %v362 = vmul.f32 %v359, %v68
    %v363 = vmul.f32 %v359, %v69
    %v364 = vadd.f32 %v354, %v360
    %v365 = vadd.f32 %v355, %v361
    %v366 = vadd.f32 %v356, %v362
    %v367 = vadd.f32 %v357, %v363
    %368 = vrot.lane.b32.xlu0 %v364, 16
    %v369 = vpop.permute.xlu0 %368
    %v370 = vsel %vm108, %v369, %v364
    %371 = vrot.lane.b32.xlu0 %v365, 16
    %v372 = vpop.permute.xlu0 %371
    %v373 = vsel %vm108, %v372, %v365
    %374 = vrot.lane.b32.xlu0 %v366, 16
    %v375 = vpop.permute.xlu0 %374
    %v376 = vsel %vm108, %v375, %v366
    %377 = vrot.lane.b32.xlu0 %v367, 16
    %v378 = vpop.permute.xlu0 %377
    %v379 = vsel %vm108, %v378, %v367
    %380 = vrot.lane.b32.xlu0 %v370, 16
    %v381 = vpop.permute.xlu0 %380
    %382 = vrot.lane.b32.xlu0 %v373, 16
    %v383 = vpop.permute.xlu0 %382
    %384 = vrot.lane.b32.xlu0 %v376, 16
    %v385 = vpop.permute.xlu0 %384
    %386 = vrot.lane.b32.xlu0 %v379, 16
    %v387 = vpop.permute.xlu0 %386
    %v388 = vsel %vm108, %v381, %v364
    %v389 = vsel %vm108, %v383, %v365
    %v390 = vsel %vm108, %v385, %v366
    %v391 = vsel %vm108, %v387, %v367
    %396 = vrot.lane.b32.xlu0 %v388, 113
    %v397 = vpop.permute.xlu0 %396
    %398 = vrot.lane.b32.xlu0 %v389, 113
    %v399 = vpop.permute.xlu0 %398
    %400 = vrot.lane.b32.xlu0 %v390, 113
    %v401 = vpop.permute.xlu0 %400
    %402 = vrot.lane.b32.xlu0 %v391, 113
    %v403 = vpop.permute.xlu0 %402
    %v408 = vsel %vm133, %v397, 0.0
    %v409 = vsel %vm133, %v399, 0.0
    %v410 = vsel %vm133, %v401, 0.0
    %v411 = vsel %vm133, %v403, 0.0
    %v412 = vadd.f32 %v328, %v408
    %v413 = vadd.f32 %v329, %v409
    %v414 = vadd.f32 %v330, %v410
    %v415 = vadd.f32 %v331, %v411
    %s416 = sld [smem:[#allocation2 + $0x4]]
    %v417 = vstv %s416
    %v418 = vmul.f32 %v417, %v54
    %v419 = vmul.f32 %v417, %v55
    %v420 = vmul.f32 %v417, %v62
    %v421 = vmul.f32 %v417, %v63
    %s422 = sld [smem:[#allocation2 + $0xd]]
    %v423 = vstv %s422
    %v424 = vmul.f32 %v423, %v56
    %v425 = vmul.f32 %v423, %v57
    %v426 = vmul.f32 %v423, %v64
    %v427 = vmul.f32 %v423, %v65
    %v428 = vadd.f32 %v418, %v424
    %v429 = vadd.f32 %v419, %v425
    %v430 = vadd.f32 %v420, %v426
    %v431 = vadd.f32 %v421, %v427
    %s432 = sld [smem:[#allocation2 + $0x16]]
    %v433 = vstv %s432
    %v434 = vmul.f32 %v433, %v58
    %v435 = vmul.f32 %v433, %v59
    %v436 = vmul.f32 %v433, %v66
    %v437 = vmul.f32 %v433, %v67
    %v438 = vadd.f32 %v428, %v434
    %v439 = vadd.f32 %v429, %v435
    %v440 = vadd.f32 %v430, %v436
    %v441 = vadd.f32 %v431, %v437
    %s442 = sld [smem:[#allocation2 + $0x1f]]
    %v443 = vstv %s442
    %v444 = vmul.f32 %v443, %v60
    %v445 = vmul.f32 %v443, %v61
    %v446 = vmul.f32 %v443, %v68
    %v447 = vmul.f32 %v443, %v69
    %v448 = vadd.f32 %v438, %v444
    %v449 = vadd.f32 %v439, %v445
    %v450 = vadd.f32 %v440, %v446
    %v451 = vadd.f32 %v441, %v447
    %v452 = vadd.f32 %v412, %v448
    %v453 = vadd.f32 %v413, %v449
    %v454 = vadd.f32 %v414, %v450
    %v455 = vadd.f32 %v415, %v451
    %s456 = sld [smem:[#allocation2 + $0x5]]
    %v457 = vstv %s456
    %v458 = vmul.f32 %v457, %v54
    %v459 = vmul.f32 %v457, %v55
    %v460 = vmul.f32 %v457, %v62
    %v461 = vmul.f32 %v457, %v63
    %s462 = sld [smem:[#allocation2 + $0xe]]
    %v463 = vstv %s462
    %v464 = vmul.f32 %v463, %v56
    %v465 = vmul.f32 %v463, %v57
    %v466 = vmul.f32 %v463, %v64
    %v467 = vmul.f32 %v463, %v65
    %v468 = vadd.f32 %v458, %v464
    %v469 = vadd.f32 %v459, %v465
    %v470 = vadd.f32 %v460, %v466
    %v471 = vadd.f32 %v461, %v467
    %s472 = sld [smem:[#allocation2 + $0x17]]
    %v473 = vstv %s472
    %v474 = vmul.f32 %v473, %v58
    %v475 = vmul.f32 %v473, %v59
    %v476 = vmul.f32 %v473, %v66
    %v477 = vmul.f32 %v473, %v67
    %v478 = vadd.f32 %v468, %v474
    %v479 = vadd.f32 %v469, %v475
    %v480 = vadd.f32 %v470, %v476
    %v481 = vadd.f32 %v471, %v477
    %s482 = sld [smem:[#allocation2 + $0x20]]
    %v483 = vstv %s482
    %v484 = vmul.f32 %v483, %v60
    %v485 = vmul.f32 %v483, %v61
    %v486 = vmul.f32 %v483, %v68
    %v487 = vmul.f32 %v483, %v69
    %v488 = vadd.f32 %v478, %v484
    %v489 = vadd.f32 %v479, %v485
    %v490 = vadd.f32 %v480, %v486
    %v491 = vadd.f32 %v481, %v487
    %492 = vrot.lane.b32.xlu0 %v488, 16
    %v493 = vpop.permute.xlu0 %492
    %v494 = vsel %vm108, %v493, %v488
    %495 = vrot.lane.b32.xlu0 %v489, 16
    %v496 = vpop.permute.xlu0 %495
    %v497 = vsel %vm108, %v496, %v489
    %498 = vrot.lane.b32.xlu0 %v490, 16
    %v499 = vpop.permute.xlu0 %498
    %v500 = vsel %vm108, %v499, %v490
    %501 = vrot.lane.b32.xlu0 %v491, 16
    %v502 = vpop.permute.xlu0 %501
    %v503 = vsel %vm108, %v502, %v491
    %504 = vrot.lane.b32.xlu0 %v494, 16
    %v505 = vpop.permute.xlu0 %504
    %506 = vrot.lane.b32.xlu0 %v497, 16
    %v507 = vpop.permute.xlu0 %506
    %508 = vrot.lane.b32.xlu0 %v500, 16
    %v509 = vpop.permute.xlu0 %508
    %510 = vrot.lane.b32.xlu0 %v503, 16
    %v511 = vpop.permute.xlu0 %510
    %v512 = vsel %vm108, %v505, %v488
    %v513 = vsel %vm108, %v507, %v489
    %v514 = vsel %vm108, %v509, %v490
    %v515 = vsel %vm108, %v511, %v491
    %520 = vrot.lane.b32.xlu0 %v512, 127
    %v521 = vpop.permute.xlu0 %520
    %522 = vrot.lane.b32.xlu0 %v513, 127
    %v523 = vpop.permute.xlu0 %522
    %524 = vrot.lane.b32.xlu0 %v514, 127
    %v525 = vpop.permute.xlu0 %524
    %526 = vrot.lane.b32.xlu0 %v515, 127
    %v527 = vpop.permute.xlu0 %526
    %v532 = vsel %vm291, %v521, 0.0
    %v533 = vsel %vm291, %v523, 0.0
    %v534 = vsel %vm291, %v525, 0.0
    %v535 = vsel %vm291, %v527, 0.0
    %v536 = vadd.f32 %v452, %v532
    %v537 = vadd.f32 %v453, %v533
    %v538 = vadd.f32 %v454, %v534
    %v539 = vadd.f32 %v455, %v535
    %s540 = sld [smem:[#allocation2 + $0x6]]
    %v541 = vstv %s540
    %v542 = vmul.f32 %v541, %v54
    %v543 = vmul.f32 %v541, %v55
    %v544 = vmul.f32 %v541, %v62
    %v545 = vmul.f32 %v541, %v63
    %s546 = sld [smem:[#allocation2 + $0xf]]
    %v547 = vstv %s546
    %v548 = vmul.f32 %v547, %v56
    %v549 = vmul.f32 %v547, %v57
    %v550 = vmul.f32 %v547, %v64
    %v551 = vmul.f32 %v547, %v65
    %v552 = vadd.f32 %v542, %v548
    %v553 = vadd.f32 %v543, %v549
    %v554 = vadd.f32 %v544, %v550
    %v555 = vadd.f32 %v545, %v551
    %s556 = sld [smem:[#allocation2 + $0x18]]
    %v557 = vstv %s556
    %v558 = vmul.f32 %v557, %v58
    %v559 = vmul.f32 %v557, %v59
    %v560 = vmul.f32 %v557, %v66
    %v561 = vmul.f32 %v557, %v67
    %v562 = vadd.f32 %v552, %v558
    %v563 = vadd.f32 %v553, %v559
    %v564 = vadd.f32 %v554, %v560
    %v565 = vadd.f32 %v555, %v561
    %s566 = sld [smem:[#allocation2 + $0x21]]
    %v567 = vstv %s566
    %v568 = vmul.f32 %v567, %v60
    %v569 = vmul.f32 %v567, %v61
    %v570 = vmul.f32 %v567, %v68
    %v571 = vmul.f32 %v567, %v69
    %v572 = vadd.f32 %v562, %v568
    %v573 = vadd.f32 %v563, %v569
    %v574 = vadd.f32 %v564, %v570
    %v575 = vadd.f32 %v565, %v571
    %576 = vrot.lane.b32.xlu0 %v572, 16
    %v577 = vpop.permute.xlu0 %576
    %v578 = vsel %vm108, %v577, %v572
    %579 = vrot.lane.b32.xlu0 %v573, 16
    %v580 = vpop.permute.xlu0 %579
    %v581 = vsel %vm108, %v580, %v573
    %582 = vrot.lane.b32.xlu0 %v574, 16
    %v583 = vpop.permute.xlu0 %582
    %v584 = vsel %vm108, %v583, %v574
    %585 = vrot.lane.b32.xlu0 %v575, 16
    %v586 = vpop.permute.xlu0 %585
    %v587 = vsel %vm108, %v586, %v575
    %588 = vrot.lane.b32.xlu0 %v578, 16
    %v589 = vpop.permute.xlu0 %588
    %590 = vrot.lane.b32.xlu0 %v581, 16
    %v591 = vpop.permute.xlu0 %590
    %592 = vrot.lane.b32.xlu0 %v584, 16
    %v593 = vpop.permute.xlu0 %592
    %594 = vrot.lane.b32.xlu0 %v587, 16
    %v595 = vpop.permute.xlu0 %594
    %v596 = vsel %vm108, %v589, %v572
    %v597 = vsel %vm108, %v591, %v573
    %v598 = vsel %vm108, %v593, %v574
    %v599 = vsel %vm108, %v595, %v575
    %604 = vrot.lane.b32.xlu0 %v596, 113
    %v605 = vpop.permute.xlu0 %604
    %606 = vrot.lane.b32.xlu0 %v597, 113
    %v607 = vpop.permute.xlu0 %606
    %608 = vrot.lane.b32.xlu0 %v598, 113
    %v609 = vpop.permute.xlu0 %608
    %610 = vrot.lane.b32.xlu0 %v599, 113
    %v611 = vpop.permute.xlu0 %610
    %v616 = vsel %vm133, %v605, 0.0
    %v617 = vsel %vm133, %v607, 0.0
    %v618 = vsel %vm133, %v609, 0.0
    %v619 = vsel %vm133, %v611, 0.0
    %vm624 = vcmask 1046528
    %v625 = vrot.slane %v616, 1
    %v626 = vrot.slane %v617, 1
    %v627 = vsel %vm624, %v625, %v626
    %v628 = vrot.slane %v618, 1
    %v629 = vrot.slane %v619, 1
    %v630 = vsel %vm624, %v628, %v629
    %v635 = vsel %vm624, %v626, 0.0
    %v636 = vsel %vm624, %v629, 0.0
    %v637 = vadd.f32 %v536, %v627
    %v638 = vadd.f32 %v537, %v635
    %v639 = vadd.f32 %v538, %v630
    %v640 = vadd.f32 %v539, %v636
    %s641 = sld [smem:[#allocation2 + $0x7]]
    %v642 = vstv %s641
    %v643 = vmul.f32 %v642, %v54
    %v644 = vmul.f32 %v642, %v55
    %v645 = vmul.f32 %v642, %v62
    %v646 = vmul.f32 %v642, %v63
    %s647 = sld [smem:[#allocation2 + $0x10]]
    %v648 = vstv %s647
    %v649 = vmul.f32 %v648, %v56
    %v650 = vmul.f32 %v648, %v57
    %v651 = vmul.f32 %v648, %v64
    %v652 = vmul.f32 %v648, %v65
    %v653 = vadd.f32 %v643, %v649
    %v654 = vadd.f32 %v644, %v650
    %v655 = vadd.f32 %v645, %v651
    %v656 = vadd.f32 %v646, %v652
    %s657 = sld [smem:[#allocation2 + $0x19]]
    %v658 = vstv %s657
    %v659 = vmul.f32 %v658, %v58
    %v660 = vmul.f32 %v658, %v59
    %v661 = vmul.f32 %v658, %v66
    %v662 = vmul.f32 %v658, %v67
    %v663 = vadd.f32 %v653, %v659
    %v664 = vadd.f32 %v654, %v660
    %v665 = vadd.f32 %v655, %v661
    %v666 = vadd.f32 %v656, %v662
    %s667 = sld [smem:[#allocation2 + $0x22]]
    %v668 = vstv %s667
    %v669 = vmul.f32 %v668, %v60
    %v670 = vmul.f32 %v668, %v61
    %v671 = vmul.f32 %v668, %v68
    %v672 = vmul.f32 %v668, %v69
    %v673 = vadd.f32 %v663, %v669
    %v674 = vadd.f32 %v664, %v670
    %v675 = vadd.f32 %v665, %v671
    %v676 = vadd.f32 %v666, %v672
    %v681 = vrot.slane %v673, 1
    %v682 = vrot.slane %v674, 1
    %v683 = vsel %vm624, %v681, %v682
    %v684 = vrot.slane %v675, 1
    %v685 = vrot.slane %v676, 1
    %v686 = vsel %vm624, %v684, %v685
    %v691 = vsel %vm624, %v682, 0.0
    %v692 = vsel %vm624, %v685, 0.0
    %v693 = vadd.f32 %v637, %v683
    %v694 = vadd.f32 %v638, %v691
    %v695 = vadd.f32 %v639, %v686
    %v696 = vadd.f32 %v640, %v692
    %s697 = sld [smem:[#allocation2 + $0x8]]
    %v698 = vstv %s697
    %v699 = vmul.f32 %v698, %v54
    %v700 = vmul.f32 %v698, %v55
    %v701 = vmul.f32 %v698, %v62
    %v702 = vmul.f32 %v698, %v63
    %s703 = sld [smem:[#allocation2 + $0x11]]
    %v704 = vstv %s703
    %v705 = vmul.f32 %v704, %v56
    %v706 = vmul.f32 %v704, %v57
    %v707 = vmul.f32 %v704, %v64
    %v708 = vmul.f32 %v704, %v65
    %v709 = vadd.f32 %v699, %v705
    %v710 = vadd.f32 %v700, %v706
    %v711 = vadd.f32 %v701, %v707
    %v712 = vadd.f32 %v702, %v708
    %s713 = sld [smem:[#allocation2 + $0x1a]]
    %v714 = vstv %s713
    %v715 = vmul.f32 %v714, %v58
    %v716 = vmul.f32 %v714, %v59
    %v717 = vmul.f32 %v714, %v66
    %v718 = vmul.f32 %v714, %v67
    %v719 = vadd.f32 %v709, %v715
    %v720 = vadd.f32 %v710, %v716
    %v721 = vadd.f32 %v711, %v717
    %v722 = vadd.f32 %v712, %v718
    %s723 = sld [smem:[#allocation2 + $0x23]]
    %v724 = vstv %s723
    %v725 = vmul.f32 %v724, %v60
    %v726 = vmul.f32 %v724, %v61
    %v727 = vmul.f32 %v724, %v68
    %v728 = vmul.f32 %v724, %v69
    %v729 = vadd.f32 %v719, %v725
    %v730 = vadd.f32 %v720, %v726
    %v731 = vadd.f32 %v721, %v727
    %v732 = vadd.f32 %v722, %v728
    %733 = vrot.lane.b32.xlu0 %v729, 16
    %v734 = vpop.permute.xlu0 %733
    %v735 = vsel %vm108, %v734, %v729
    %736 = vrot.lane.b32.xlu0 %v730, 16
    %v737 = vpop.permute.xlu0 %736
    %v738 = vsel %vm108, %v737, %v730
    %739 = vrot.lane.b32.xlu0 %v731, 16
    %v740 = vpop.permute.xlu0 %739
    %v741 = vsel %vm108, %v740, %v731
    %742 = vrot.lane.b32.xlu0 %v732, 16
    %v743 = vpop.permute.xlu0 %742
    %v744 = vsel %vm108, %v743, %v732
    %745 = vrot.lane.b32.xlu0 %v735, 16
    %v746 = vpop.permute.xlu0 %745
    %747 = vrot.lane.b32.xlu0 %v738, 16
    %v748 = vpop.permute.xlu0 %747
    %749 = vrot.lane.b32.xlu0 %v741, 16
    %v750 = vpop.permute.xlu0 %749
    %751 = vrot.lane.b32.xlu0 %v744, 16
    %v752 = vpop.permute.xlu0 %751
    %v753 = vsel %vm108, %v746, %v729
    %v754 = vsel %vm108, %v748, %v730
    %v755 = vsel %vm108, %v750, %v731
    %v756 = vsel %vm108, %v752, %v732
    %761 = vrot.lane.b32.xlu0 %v753, 127
    %v762 = vpop.permute.xlu0 %761
    %763 = vrot.lane.b32.xlu0 %v754, 127
    %v764 = vpop.permute.xlu0 %763
    %765 = vrot.lane.b32.xlu0 %v755, 127
    %v766 = vpop.permute.xlu0 %765
    %767 = vrot.lane.b32.xlu0 %v756, 127
    %v768 = vpop.permute.xlu0 %767
    %v773 = vsel %vm291, %v762, 0.0
    %v774 = vsel %vm291, %v764, 0.0
    %v775 = vsel %vm291, %v766, 0.0
    %v776 = vsel %vm291, %v768, 0.0
    %v781 = vrot.slane %v773, 1
    %v782 = vrot.slane %v774, 1
    %v783 = vsel %vm624, %v781, %v782
    %v784 = vrot.slane %v775, 1
    %v785 = vrot.slane %v776, 1
    %v786 = vsel %vm624, %v784, %v785
    %v791 = vsel %vm624, %v782, 0.0
    %v792 = vsel %vm624, %v785, 0.0
    %v793 = vadd.f32 %v693, %v783
    %v794 = vadd.f32 %v694, %v791
    %v795 = vadd.f32 %v695, %v786
    %v796 = vadd.f32 %v696, %v792
    %s797 = sld [smem:[#allocation6 + $0x1]]
    %s798 = sld [smem:[#allocation6 + $0x2]]
    %vm799 = vcmask 130048
    %v800 = vsel %vm799, %v793, 0.0
    %v801 = vsel %vm799, %v794, 0.0
    %v802 = vadd.f32 %v800, %v801
    %v803 = vsel %vm799, %v795, 0.0
    %v804 = vadd.f32 %v802, %v803
    %v805 = vsel %vm799, %v796, 0.0
    %v806 = vadd.f32 %v804, %v805
    %807 = vadd.xlane.f32.xlu0 %v806
    %v808 = vpop.xlane.xlu0 %807
    %v809 = vrot.slane %v808, 4
    %v810 = vadd.f32 %v808, %v809
    %v811 = vrot.slane %v810, 2
    %v812 = vadd.f32 %v810, %v811
    %v813 = vrot.slane %v812, 1
    %v814 = vadd.f32 %v812, %v813
    %s815 = vtos %v814
    %v816 = vrcp.pop 512.0
    %s817 = vtos %v816
    %s818 = smul.f32 %s815, %s817
    %v819 = vstv %s818
    %v820 = vsub.f32 %v793, %v819
    %v821 = vsub.f32 %v794, %v819
    %v822 = vsub.f32 %v795, %v819
    %v823 = vsub.f32 %v796, %v819
    %v824 = vmul.f32 %v820, %v820
    %v825 = vmul.f32 %v821, %v821
    %v826 = vmul.f32 %v822, %v822
    %v827 = vmul.f32 %v823, %v823
    %v828 = vsel %vm799, %v824, 0.0
    %v829 = vsel %vm799, %v825, 0.0
    %v830 = vadd.f32 %v828, %v829
    %v831 = vsel %vm799, %v826, 0.0
    %v832 = vadd.f32 %v830, %v831
    %v833 = vsel %vm799, %v827, 0.0
    %v834 = vadd.f32 %v832, %v833
    %835 = vadd.xlane.f32.xlu0 %v834
    %v836 = vpop.xlane.xlu0 %835
    %v837 = vrot.slane %v836, 4
    %v838 = vadd.f32 %v836, %v837
    %v839 = vrot.slane %v838, 2
    %v840 = vadd.f32 %v838, %v839
    %v841 = vrot.slane %v840, 1
    %v842 = vadd.f32 %v840, %v841
    %s843 = vtos %v842
    %v844 = vrcp.pop 512.0
    %s845 = vtos %v844
    %s846 = smul.f32 %s843, %s845
    %s847 = sadd.f32 %s846, 1e-05
    %v848 = vstv %s847
    %v849 = vrsqrt.pop %v848
    %s850 = vtos %v849
    %s851 = smul.f32 %s797, %s850
    %s852 = smul.f32 %s818, %s851
    %s853 = ssub.f32 %s798, %s852
    %v854 = vstv %s851
    %v855 = vmul.f32 %v793, %v854
    %v856 = vmul.f32 %v794, %v854
    %v857 = vmul.f32 %v795, %v854
    %v858 = vmul.f32 %v796, %v854
    %v859 = vstv %s853
    %v860 = vadd.f32 %v855, %v859
    %v861 = vadd.f32 %v856, %v859
    %v862 = vadd.f32 %v857, %v859
    %v863 = vadd.f32 %v858, %v859
    %v864 = vmax.f32 %v860, 0.0
    %v865 = vmax.f32 %v861, 0.0
    %v866 = vmax.f32 %v862, 0.0
    %v867 = vmax.f32 %v863, 0.0
    %v868 = vxor.u32 %v864, 2147483648
    %v869 = vxor.u32 %v865, 2147483648
    %v870 = vxor.u32 %v866, 2147483648
    %v871 = vxor.u32 %v867, 2147483648
    %v872 = vmul.f32 %v868, 1.442695
    %v873 = vpow.pop %v872
    %v874 = vmul.f32 %v869, 1.442695
    %v875 = vpow.pop %v874
    %v876 = vmul.f32 %v870, 1.442695
    %v877 = vpow.pop %v876
    %v878 = vmul.f32 %v871, 1.442695
    %v879 = vpow.pop %v878
    %v880 = vadd.f32 %v873, 1.0
    %v881 = vadd.f32 %v875, 1.0
    %v882 = vadd.f32 %v877, 1.0
    %v883 = vadd.f32 %v879, 1.0
    %v884 = vrcp.pop %v880
    %v885 = vmul.f32 1.0, %v884
    %v886 = vrcp.pop %v881
    %v887 = vmul.f32 1.0, %v886
    %v888 = vrcp.pop %v882
    %v889 = vmul.f32 1.0, %v888
    %v890 = vrcp.pop %v883
    %v891 = vmul.f32 1.0, %v890
    %892 = vst.msk [vmem:[#allocation9] sm:$0xff] %vm799, %v885
    %893 = vst.msk [vmem:[#allocation9 + $0x8] sm:$0xff] %vm799, %v887
    %894 = vst.msk [vmem:[#allocation9 + $0x10] sm:$0xff] %vm799, %v889
    %895 = vst.msk [vmem:[#allocation9 + $0x18] sm:$0xff] %vm799, %v891
    // Predicated region
    $region26: #{debugnet_forward.1} parent=1 // pred_check
      _
    $region27: #{debugnet_forward.1} parent=1 // pred_check_branch
      %897 = sbr.rel (0) target = $region29
    $region28: #{debugnet_forward.1} parent=1 // pred_region
      %s899 = ssub.s32 512, 512
      %900 = vsyncadd [#allocation4], %s899
      %s901 = sshll.u32 [#allocation9], 4
      %s902 = int_to_ptr.vmem [resolvable:$true] %s901
      %907 = dma.vmem_to_hbm [thread:$0]  %s902, 512, %s3, [#allocation4], 128, 128, 8
    $region29: #{debugnet_forward.1} parent=1 // pred_fallthru
      _
    // Predicated region
    $region30: #{debugnet_forward.1} parent=1 // pred_check
      _
    $region31: #{debugnet_forward.1} parent=1 // pred_check_branch
      %909 = sbr.rel (0) target = $region33
    $region32: #{debugnet_forward.1} parent=1 // pred_region
      %910 = dma.done [#allocation4], 512
    $region33: #{debugnet_forward.1} parent=1 // pred_fallthru
      _
    %911 = vsyncpa [#allocation3], 1
    %912 = vsyncpa [#allocation4], 1
    %913 = vsyncpa [#allocation5], 1
    %914 = vsyncpa [#allocation7], 1

</llo_original>
